<compile_context>
chip_gen: v5e
topology: v5e:2x2
jax: 0.10.0
libtpu: 0.0.40
codegen_flags: <defaults>
</compile_context>

<pallas_src>
import functools
import math

import jax
import jax.numpy as jnp
from jax.experimental import pallas as pl
from jax.experimental.pallas import tpu as pltpu


def _quadratic_kernel(a_ref, x_ref, o_ref):
    # a_ref: SMEM (B,) f32      -- precomputed per-batch coefficient a_b
    # x_ref: VMEM (1, tc, tn)   -- one tile of x
    # o_ref: VMEM (1, tc, tn)
    b = pl.program_id(0)
    a = a_ref[b]
    ax = a * x_ref[...]
    o_ref[...] = pl.reciprocal(1.0 + ax * ax, approx=False)


def _round_up(v, m):
    return ((v + m - 1) // m) * m


def _largest_divisor_tile(padded_dim, unit, max_tile):
    """Largest multiple of `unit` that divides `padded_dim` and is <= max_tile.

    `padded_dim` is already a multiple of `unit`, so `unit` is always a valid
    fallback and the search terminates.
    """
    t = min(max_tile, padded_dim)
    t -= t % unit
    while t > unit and padded_dim % t != 0:
        t -= unit
    return max(t, unit)


def quadratic_forward(x, codes, agnostic_a, weight, factor,
                      *, max_sublane_tile=256, max_lane_tile=8192,
                      target_block_bytes=4 << 20):
    """x: (B, ...) f32 (2D/3D/4D), codes: (B, code) f32 -> same shape as x."""
    if x.ndim < 2:
        raise ValueError("quadratic_forward expects x with rank >= 2 "
                         f"(got shape {x.shape})")

    orig_shape = x.shape
    B = x.shape[0]
    itemsize = jnp.dtype(x.dtype).itemsize

    # Hoist the per-batch coefficient out of the kernel (tiny (B,) matvec).
    a_vec = (agnostic_a[0] + factor * (codes @ weight[0])).astype(jnp.float32)

    # --- Lay x out as (B, C, N) with a full-vreg-friendly shape. -------------
    if x.ndim >= 3:
        C = x.shape[1]
        N = int(math.prod(x.shape[2:]))
        x3 = x.reshape(B, C, N)
        twod = False
    else:
        # 2D x: fold the trailing dim into (rows, lane) with rows a multiple
        # of 8 so the block uses all 8 sublanes of each vreg.
        M = x.shape[1]
        lane = 512 if M >= 8 * 512 else 128
        rows = _round_up(max(1, pl.cdiv(M, lane)), 8)
        flat = rows * lane
        x2 = x if flat == M else jnp.pad(x, ((0, 0), (0, flat - M)))
        x3 = x2.reshape(B, rows, lane)
        C, N = rows, lane
        twod = True

    # Pad to lane-dense / sublane-aligned dims (single pad, sliced off later).
    Cp = _round_up(C, 8)
    Np = _round_up(N, 128)
    if (Cp, Np) != (C, N):
        x3 = jnp.pad(x3, ((0, 0), (0, Cp - C), (0, Np - N)))

    # --- Tile selection: multi-MiB blocks, no extra padding from tiling. -----
    tn = _largest_divisor_tile(Np, 128, max_lane_tile)
    tc_cap = max(8, min(max_sublane_tile,
                        (target_block_bytes // (tn * itemsize)) // 8 * 8))
    tc = _largest_divisor_tile(Cp, 8, tc_cap)

    # Keep a handful of grid steps so v7x's two TensorCores both get work.
    def _steps(tc_, tn_):
        return B * (Cp // tc_) * (Np // tn_)
    while _steps(tc, tn) < 4:
        if tc >= 16 and (tc // 2) % 8 == 0:
            tc //= 2
        elif tn >= 256 and (tn // 2) % 128 == 0:
            tn //= 2
        else:
            break

    block_bytes = tc * tn * itemsize
    # in + out, double-buffered, plus headroom; floor at 16 MiB, cap below
    # v7x's 64 MiB physical VMEM.
    vmem_limit = int(min(48 << 20, max(16 << 20, 4 * block_bytes + (4 << 20))))

    grid = (B, Cp // tc, Np // tn)

    cost = pl.CostEstimate(
        flops=4 * B * Cp * Np,
        transcendentals=0,
        bytes_accessed=2 * B * Cp * Np * itemsize,
    )

    out3 = pl.pallas_call(
        _quadratic_kernel,
        out_shape=jax.ShapeDtypeStruct((B, Cp, Np), x.dtype),
        grid=grid,
        in_specs=[
            pl.BlockSpec(memory_space=pltpu.SMEM),                  # a_vec (B,)
            pl.BlockSpec((1, tc, tn), lambda b, i, j: (b, i, j)),   # x tile
        ],
        out_specs=pl.BlockSpec((1, tc, tn), lambda b, i, j: (b, i, j)),
        compiler_params=pltpu.CompilerParams(
            dimension_semantics=("parallel", "parallel", "parallel"),
            vmem_limit_bytes=vmem_limit),
        cost_estimate=cost,
    )(a_vec, x3)

    # Undo padding / reshape back to the original shape.
    if twod:
        M = orig_shape[1]
        return out3.reshape(B, Cp * Np)[:, :M].reshape(orig_shape)
    C0 = orig_shape[1]
    N0 = int(math.prod(orig_shape[2:]))
    return out3[:, :C0, :N0].reshape(orig_shape)


def quadratic_reference(x, codes, agnostic_a, weight, factor):
    # Plain-JAX mirror of the PyTorch forward, any rank >= 2.
    a = agnostic_a + factor * (codes @ weight.T)              # (B, 1)
    a = a.reshape((x.shape[0],) + (1,) * (x.ndim - 1))        # (B, 1, ..., 1)
    return 1.0 / (1.0 + (a * x) ** 2)


if __name__ == "__main__":
    # Small, module-consistent shapes.
    B, C, H, W = 2, 4, 16, 16
    code = 8
    factor = 0.1

    key = jax.random.PRNGKey(0)
    kx, kc, kw, k2 = jax.random.split(key, 4)

    x = jax.random.normal(kx, (B, C, H, W), dtype=jnp.float32)
    codes = jax.random.normal(kc, (B, code), dtype=jnp.float32)

    # Deterministic parameter init (mirrors __init__ / reset_parameters shapes).
    agnostic_a = jnp.array([1.0], dtype=jnp.float32)                 # (1,)
    bound = 1.0 / math.sqrt(code)
    weight = jax.random.uniform(kw, (1, code), dtype=jnp.float32,
                                minval=-bound, maxval=bound)         # (1, code)

    # 4D path (exercises C padding 4 -> 8).
    out = quadratic_forward(x, codes, agnostic_a, weight, factor)
    out = jax.block_until_ready(out)
    ref = quadratic_reference(x, codes, agnostic_a, weight, factor)
    assert out.shape == (B, C, H, W)
    assert jnp.allclose(out, ref, rtol=1e-5, atol=1e-5)

    # 2D path (exercises the (rows, lane) fold + flat padding 200 -> 1024).
    x2d = jax.random.normal(k2, (B, 200), dtype=jnp.float32)
    out2d = quadratic_forward(x2d, codes, agnostic_a, weight, factor)
    out2d = jax.block_until_ready(out2d)
    ref2d = quadratic_reference(x2d, codes, agnostic_a, weight, factor)
    assert out2d.shape == (B, 200)
    assert jnp.allclose(out2d, ref2d, rtol=1e-5, atol=1e-5)

    print("KERNEL_OK")
</pallas_src>

<mosaic_0001>
module attributes {stable_mosaic.version = 11 : i64} {
  func.func @_quadratic_kernel(%arg0: i32, %arg1: i32, %arg2: i32, %arg3: memref<2xf32, #tpu.memory_space<smem>>, %arg4: memref<1x8x128xf32, #tpu.memory_space<vmem>>, %arg5: memref<1x8x128xf32, #tpu.memory_space<vmem>>) attributes {dimension_semantics = [#tpu.dimension_semantics<parallel>, #tpu.dimension_semantics<parallel>, #tpu.dimension_semantics<parallel>], iteration_bounds = array<i64: 2, 1, 2>, scalar_prefetch = 0 : i64, scratch_operands = 0 : i64, tpu.core_type = #tpu.core_type<tc>, window_params = [{transform_indices = @transform_0, window_bounds = array<i64: 2>}, {transform_indices = @transform_1, window_bounds = array<i64: 1, 8, 128>}, {transform_indices = @transform_2, window_bounds = array<i64: 1, 8, 128>}]} {
    %0 = arith.index_cast %arg0 : i32 to index
    %1 = memref.load %arg3[%0] : memref<2xf32, #tpu.memory_space<smem>>
    %c0 = arith.constant 0 : index
    %c0_0 = arith.constant 0 : index
    %c0_1 = arith.constant 0 : index
    %2 = vector.load %arg4[%c0, %c0_0, %c0_1] : memref<1x8x128xf32, #tpu.memory_space<vmem>>, vector<1x8x128xf32>
    %3 = vector.broadcast %1 : f32 to vector<1x8x128xf32>
    %4 = arith.mulf %3, %2 : vector<1x8x128xf32>
    %5 = arith.mulf %4, %4 : vector<1x8x128xf32>
    %cst = arith.constant 1.000000e+00 : f32
    %6 = vector.broadcast %cst : f32 to vector<1x8x128xf32>
    %7 = arith.addf %6, %5 : vector<1x8x128xf32>
    %8 = tpu.reciprocal %7 : vector<1x8x128xf32> -> vector<1x8x128xf32>
    %c0_2 = arith.constant 0 : index
    %c0_3 = arith.constant 0 : index
    %c0_4 = arith.constant 0 : index
    %9 = vector.load %arg5[%c0_2, %c0_3, %c0_4] : memref<1x8x128xf32, #tpu.memory_space<vmem>>, vector<1x8x128xf32>
    tpu.vector_store %arg5[%c0_2, %c0_3, %c0_4], %8 {strides = array<i32>} : memref<1x8x128xf32, #tpu.memory_space<vmem>>, vector<1x8x128xf32>,
    return
  }
  func.func @transform_0(%arg0: i32, %arg1: i32, %arg2: i32) -> i32 {
    %c0_i32 = arith.constant 0 : i32
    %c0_i32_0 = arith.constant 0 : i32
    return %c0_i32 : i32
  }
  func.func @transform_1(%arg0: i32, %arg1: i32, %arg2: i32) -> (i32, i32, i32) {
    %c0_i32 = arith.constant 0 : i32
    return %arg0, %arg1, %arg2 : i32, i32, i32
  }
  func.func @transform_2(%arg0: i32, %arg1: i32, %arg2: i32) -> (i32, i32, i32) {
    %c0_i32 = arith.constant 0 : i32
    return %arg0, %arg1, %arg2 : i32, i32, i32
  }
}

</mosaic_0001>

<llo_original>
// kernel: tpu_custom_call.1
$region0: #{tpu_custom_call.1}
  #allocation0 [shape = 'u32[]', space=smem, size = 0x4, offset = 0x4, fixed_abs, tag = 'smem constant byte address 0x4 - core index']
  #allocation1 [shape = 'u32[72,128]{1,0:T(1,128)}', space=vmem, size = 0x9000, scoped, tag = 'internal scratch']
  %s0 = inlined_call_operand.hbm [shape: f32[2], index: 0, kind: input, shape index: {}]
  %s1 = inlined_call_operand.hbm [shape: f32[2,8,256], index: 1, kind: input, shape index: {}]
  %s2 = inlined_call_operand.hbm [shape: f32[2,8,256], index: 2, kind: output, shape index: {}]
  %s3 = sld [smem:[#allocation0]]
  $region49: #{tpu_custom_call.1} parent=0
    _
  %s5 = ssub.s32 1, %s3
  %s6 = scalar_select 0, %s5, %s3
  $region1: #{tpu_custom_call.1} parent=0
    #allocation2 [shape = 'u8[512]{0}', space=smem, size = 0x200, scoped, tag = 'input window, operand 0, single buffered']
    #allocation3 [shape = 's32[2]{0}', space=sflag, size = 0x8, scoped, tag = 'scoped memory for tpu_custom_call.1']
    #allocation4 [shape = 's32[2]{0}', space=sflag, size = 0x8, scoped, tag = 'scoped memory for tpu_custom_call.1']
    #allocation5 [shape = 's32[2]{0}', space=sflag, size = 0x8, scoped, tag = 'scoped memory for tpu_custom_call.1']
    #allocation6 [shape = 'u8[8192]{0}', space=vmem, size = 0x2000, scoped, tag = 'input window, operand 1']
    #allocation7 [shape = 'u8[8192]{0}', space=vmem, size = 0x2000, scoped, tag = 'output window, operand 0']
    %7 = vsyncpa [#allocation5], 0
    %8 = vsyncpa [#allocation3], 0
    %s9 = scalar_lea.sflag [#allocation3], 1
    %10 = vsyncpa %s9, 0
    %11 = vsyncpa [#allocation4], 0
    %s12 = scalar_lea.sflag [#allocation4], 1
    %13 = vsyncpa %s12, 0
    loop: start=0, step=1, limit=6
    $region2: #{tpu_custom_call.1} parent=1 // loop_pre_header
      _
    $region3: #{tpu_custom_call.1} parent=1 // loop_header
      %s15 = sphi 0, %s19
      %p16 = scmp.ge.s32.totalorder %s15, 6
      %s22 = sphi 0, %s41
      %s23 = sphi 0, %s37
      %s24 = sphi 0, %s33
      %s25 = sphi 0, %s22
      %s26 = sphi 0, %s23
      %s27 = sphi 0, %s24
      %s28 = sphi 0, %s25
      %s29 = sphi 0, %s26
      %s30 = sphi 0, %s27
      %s42 = sphi 0, %s42
      %s44 = sphi 0, %s42
      %s45 = sphi 0, %s44
      %s59 = sphi 0, %s45
      %s69 = sphi 0, %s71
      %s72 = sphi 0, %s69
      %s73 = sphi 0, %s72
      %s89 = sphi 0, %s73
      %s99 = sphi 0, %s101
      %s102 = sphi 0, %s99
      %s103 = sphi 0, %s102
      %s119 = sphi 0, %s103
    $region4: #{tpu_custom_call.1} parent=1 // loop_header_branch
      %18 = sbr.rel (%p16) target = $region8
    $region5: #{tpu_custom_call.1} parent=1 // loop_body
      %s20 = ssub.s32 %s15, 1
      %s21 = ssub.s32 %s15, 2
      %s31 = sadd.s32 1, %s24
      %p32 = scmp.ge.s32.totalorder %s31, 2
      %s33 = scalar_select %p32, 0, %s31
      %s34 = sadd.s32 1, %s23
      %s35 = scalar_select %p32, %s34, %s23
      %p36 = scmp.ge.s32.totalorder %s35, 1
      %s37 = scalar_select %p36, 0, %s35
      %s38 = sadd.s32 1, %s22
      %s39 = scalar_select %p36, %s38, %s22
      %p40 = scmp.ge.s32.totalorder %s39, 2
      %s41 = scalar_select %p40, 0, %s39
      %s43 = sadd.s32 %s42, 1
      %p46 = scmp.eq.s32.totalorder %s15, 3
      %p47 = scmp.ne.s32.totalorder %s42, %s44
      %p48 = scmp.eq.s32.totalorder %s15, 0
      %p49 = por %p47, %p48
      %p50 = scmp.ne.s32.totalorder %s42, %s44
      %p51 = scmp.eq.s32.totalorder %s20, 3
      %p52 = por %p50, %p51
      %p53 = scmp.ne.s32.totalorder %s44, %s45
      %p54 = scmp.eq.s32.totalorder %s20, 0
      %p55 = por %p53, %p54
      %p56 = scmp.ne.s32.totalorder %s44, %s45
      %p57 = scmp.eq.s32.totalorder %s21, 3
      %p58 = por %p56, %p57
      %p60 = scmp.ne.s32.totalorder %s45, %s59
      %p61 = scmp.eq.s32.totalorder %s21, 0
      %p62 = por %p60, %p61
      %s63 = ssub.s32 %s22, %s41
      %s64 = ssub.s32 %s23, %s37
      %s65 = sor.u32 %s63, %s64
      %s66 = ssub.s32 %s24, %s33
      %s67 = sor.u32 %s65, %s66
      %p68 = scmp.eq.s32.totalorder %s67, 0
      %s70 = sadd.s32 %s69, 1
      %s71 = scalar_select %p68, %s69, %s70
      %p74 = pneg %p68
      %p75 = scmp.eq.s32.totalorder %s15, 3
      %p76 = por %p74, %p75
      %p77 = scmp.ne.s32.totalorder %s69, %s72
      %p78 = scmp.eq.s32.totalorder %s15, 0
      %p79 = por %p77, %p78
      %p80 = scmp.ne.s32.totalorder %s69, %s72
      %p81 = scmp.eq.s32.totalorder %s20, 3
      %p82 = por %p80, %p81
      %p83 = scmp.ne.s32.totalorder %s72, %s73
      %p84 = scmp.eq.s32.totalorder %s20, 0
      %p85 = por %p83, %p84
      %p86 = scmp.ne.s32.totalorder %s72, %s73
      %p87 = scmp.eq.s32.totalorder %s21, 3
      %p88 = por %p86, %p87
      %p90 = scmp.ne.s32.totalorder %s73, %s89
      %p91 = scmp.eq.s32.totalorder %s21, 0
      %p92 = por %p90, %p91
      %s93 = ssub.s32 %s22, %s41
      %s94 = ssub.s32 %s23, %s37
      %s95 = sor.u32 %s93, %s94
      %s96 = ssub.s32 %s24, %s33
      %s97 = sor.u32 %s95, %s96
      %p98 = scmp.eq.s32.totalorder %s97, 0
      %s100 = sadd.s32 %s99, 1
      %s101 = scalar_select %p98, %s99, %s100
      %p104 = pneg %p98
      %p105 = scmp.eq.s32.totalorder %s15, 3
      %p106 = por %p104, %p105
      %p107 = scmp.ne.s32.totalorder %s99, %s102
      %p108 = scmp.eq.s32.totalorder %s15, 0
      %p109 = por %p107, %p108
      %p110 = scmp.ne.s32.totalorder %s99, %s102
      %p111 = scmp.eq.s32.totalorder %s20, 3
      %p112 = por %p110, %p111
      %p113 = scmp.ne.s32.totalorder %s102, %s103
      %p114 = scmp.eq.s32.totalorder %s20, 0
      %p115 = por %p113, %p114
      %p116 = scmp.ne.s32.totalorder %s102, %s103
      %p117 = scmp.eq.s32.totalorder %s21, 3
      %p118 = por %p116, %p117
      %p120 = scmp.ne.s32.totalorder %s103, %s119
      %p121 = scmp.eq.s32.totalorder %s21, 0
      %p122 = por %p120, %p121
      %p123 = scmp.le.s32.totalorder 1, %s15
      %p124 = scmp.lt.s32.totalorder %s15, 5
      %p125 = pnand %p123, %p124
      %p126 = pneg %p125
      // Predicated region
      $region9: #{tpu_custom_call.1} parent=5 // pred_check
        _
      $region10: #{tpu_custom_call.1} parent=5 // pred_check_branch
        %128 = sbr.rel (%p125) target = $region12
      $region11: #{tpu_custom_call.1} parent=5 // pred_region
        %s129 = ssub.s32 %s15, 1
        // Predicated region
        $region13: #{tpu_custom_call.1} parent=11 // pred_check
          %p130 = pneg %p55
        $region14: #{tpu_custom_call.1} parent=11 // pred_check_branch
          %132 = sbr.rel (%p130) target = $region16
        $region15: #{tpu_custom_call.1} parent=11 // pred_region
          %134 = vsyncadd [#allocation5], 0
          %s136 = sshll.u32 %s0, 4
          %s137 = int_to_ptr.hbm [resolvable:$true] %s136
          %139 = dma.hbm_to_smem %s137, 16, [#allocation2], [#allocation5]
        $region16: #{tpu_custom_call.1} parent=11 // pred_fallthru
          _
      $region12: #{tpu_custom_call.1} parent=5 // pred_fallthru
        _
      %p140 = scmp.lt.s32.totalorder %s15, 4
      // Predicated region
      $region17: #{tpu_custom_call.1} parent=5 // pred_check
        %p141 = pneg %p140
      $region18: #{tpu_custom_call.1} parent=5 // pred_check_branch
        %143 = sbr.rel (%p141) target = $region20
      $region19: #{tpu_custom_call.1} parent=5 // pred_region
        // Predicated region
        $region21: #{tpu_custom_call.1} parent=19 // pred_check
          %p144 = pneg %p79
        $region22: #{tpu_custom_call.1} parent=19 // pred_check_branch
          %146 = sbr.rel (%p144) target = $region24
        $region23: #{tpu_custom_call.1} parent=19 // pred_region
          %s147 = sand.u32 %s69, 1
          %s148 = scalar_lea.sflag [#allocation3], %s147
          %s149 = sand.u32 %s69, 1
          %s150 = smul.addr %s149, 8
          %s151 = scalar_lea.vmem [#allocation6], %s150
          %153 = vsyncadd %s148, 0
          %s154 = smul.addr %s23, 2
          %s155 = sadd.s32 %s24, %s154
          %s156 = smul.addr %s22, 2
          %s157 = sadd.s32 %s155, %s156
          %s158 = smul.addr %s157, 8
          %s159 = scalar_lea.hbm %s1, %s158
          %s161 = sshll.u32 %s159, 4
          %s162 = int_to_ptr.hbm [resolvable:$true] %s161
          %s163 = sshll.u32 %s151, 4
          %s164 = int_to_ptr.vmem [resolvable:$true] %s163
          %166 = dma.hbm_to_vmem [thread:$0]  %s162, 128, %s164, %s148
        $region24: #{tpu_custom_call.1} parent=19 // pred_fallthru
          _
      $region20: #{tpu_custom_call.1} parent=5 // pred_fallthru
        _
      %p167 = scmp.le.s32.totalorder 1, %s15
      %p168 = scmp.lt.s32.totalorder %s15, 5
      %p169 = pnand %p167, %p168
      %p170 = pneg %p169
      // Predicated region
      $region25: #{tpu_custom_call.1} parent=5 // pred_check
        _
      $region26: #{tpu_custom_call.1} parent=5 // pred_check_branch
        %172 = sbr.rel (%p169) target = $region28
      $region27: #{tpu_custom_call.1} parent=5 // pred_region
        %s173 = ssub.s32 %s15, 1
        // Predicated region
        $region29: #{tpu_custom_call.1} parent=27 // pred_check
          %p174 = pneg %p55
        $region30: #{tpu_custom_call.1} parent=27 // pred_check_branch
          %176 = sbr.rel (%p174) target = $region32
        $region31: #{tpu_custom_call.1} parent=27 // pred_region
          %178 = dma.done [#allocation5], 16
        $region32: #{tpu_custom_call.1} parent=27 // pred_fallthru
          _
        %s179 = sand.u32 %s72, 1
        %s180 = scalar_lea.sflag [#allocation3], %s179
        %s181 = sand.u32 %s72, 1
        %s182 = smul.addr %s181, 8
        %s183 = scalar_lea.vmem [#allocation6], %s182
        // Predicated region
        $region33: #{tpu_custom_call.1} parent=27 // pred_check
          %p184 = pneg %p85
        $region34: #{tpu_custom_call.1} parent=27 // pred_check_branch
          %186 = sbr.rel (%p184) target = $region36
        $region35: #{tpu_custom_call.1} parent=27 // pred_region
          %188 = dma.done %s180, 128
        $region36: #{tpu_custom_call.1} parent=27 // pred_fallthru
          _
        %189 = sfence
        %p190 = pneg %p55
        %p191 = pneg %p52
        %s192 = sand.u32 %s72, 1
        %s193 = scalar_lea.sflag [#allocation3], %s192
        %s194 = sand.u32 %s72, 1
        %s195 = smul.addr %s194, 8
        %s196 = scalar_lea.vmem [#allocation6], %s195
        %p197 = pneg %p85
        %p198 = pneg %p82
        %p199 = pneg %p115
        %p200 = pneg %p112
        %s201 = sand.u32 %s102, 1
        %s202 = scalar_lea.sflag [#allocation4], %s201
        %s203 = sand.u32 %s102, 1
        %s204 = smul.addr %s203, 8
        %s205 = scalar_lea.vmem [#allocation7], %s204
        %s206 = sld [smem:[#allocation2 + %s25]]
        %v207 = vld [vmem:[%s183] sm:$0xff]
        %v208 = vstv %s206
        %v209 = vmul.f32 %v208, %v207
        %v210 = vmul.f32 %v209, %v209
        %v211 = vadd.f32 %v210, 1.0
        %v212 = vrcp.pop %v211
        %v213 = vmul.f32 %v211, %v212
        %v214 = vsub.f32 1.0, %v213
        %v215 = vmul.f32 %v212, %v214
        %v216 = vadd.f32 %v212, %v215
        %vm217 = vweird.f32 %v211
        %vm218 = vweird.f32 %v212
        %vm219 = vmor %vm217, %vm218
        %v220 = vsel %vm219, %v212, %v216
        %v221 = vand.u32 2147483647, %v211
        %vm222 = vcmp.eq.f32.partialorder %v221, 8.507059e+37
        %v223 = vand.u32 %v211, 2147483648
        %v224 = vor.u32 1.1754944e-38, %v223
        %v225 = vsel %vm222, %v224, %v220
        %226 = vst [vmem:[%s205] sm:$0xff] %v225
        %s227 = sand.u32 %s102, 1
        %s228 = scalar_lea.sflag [#allocation4], %s227
        %s229 = sand.u32 %s102, 1
        %s230 = smul.addr %s229, 8
        %s231 = scalar_lea.vmem [#allocation7], %s230
        // Predicated region
        $region37: #{tpu_custom_call.1} parent=27 // pred_check
          %p232 = pneg %p112
        $region38: #{tpu_custom_call.1} parent=27 // pred_check_branch
          %234 = sbr.rel (%p232) target = $region40
        $region39: #{tpu_custom_call.1} parent=27 // pred_region
          %236 = vsyncadd %s228, 0
          %s237 = smul.addr %s26, 2
          %s238 = sadd.s32 %s27, %s237
          %s239 = smul.addr %s25, 2
          %s240 = sadd.s32 %s238, %s239
          %s241 = smul.addr %s240, 8
          %s242 = scalar_lea.hbm %s2, %s241
          %s244 = sshll.u32 %s231, 4
          %s245 = int_to_ptr.vmem [resolvable:$true] %s244
          %s246 = sshll.u32 %s242, 4
          %s247 = int_to_ptr.hbm [resolvable:$true] %s246
          %249 = dma.vmem_to_hbm [thread:$0]  %s245, 128, %s247, %s228
        $region40: #{tpu_custom_call.1} parent=27 // pred_fallthru
          _
      $region28: #{tpu_custom_call.1} parent=5 // pred_fallthru
        _
      %p250 = scmp.le.s32.totalorder 2, %s15
      // Predicated region
      $region41: #{tpu_custom_call.1} parent=5 // pred_check
        %p251 = pneg %p250
      $region42: #{tpu_custom_call.1} parent=5 // pred_check_branch
        %253 = sbr.rel (%p251) target = $region44
      $region43: #{tpu_custom_call.1} parent=5 // pred_region
        %s254 = ssub.s32 %s15, 2
        // Predicated region
        $region45: #{tpu_custom_call.1} parent=43 // pred_check
          %p255 = pneg %p118
        $region46: #{tpu_custom_call.1} parent=43 // pred_check_branch
          %257 = sbr.rel (%p255) target = $region48
        $region47: #{tpu_custom_call.1} parent=43 // pred_region
          %s258 = sand.u32 %s103, 1
          %s259 = scalar_lea.sflag [#allocation4], %s258
          %s260 = sand.u32 %s103, 1
          %s261 = smul.addr %s260, 8
          %s262 = scalar_lea.vmem [#allocation7], %s261
          %264 = dma.done %s259, 128
        $region48: #{tpu_custom_call.1} parent=43 // pred_fallthru
          _
      $region44: #{tpu_custom_call.1} parent=5 // pred_fallthru
        _
    $region6: #{tpu_custom_call.1} parent=1 // loop_footer
      %s19 = sadd.s32 1, %s15
    $region7: #{tpu_custom_call.1} parent=1 // loop_footer_branch
      %14 = sbr.rel target = $region3
    $region8: #{tpu_custom_call.1} parent=1 // loop_exit
      _
    %265 = vsyncpa [#allocation3], 1
    %s266 = scalar_lea.sflag [#allocation3], 1
    %267 = vsyncpa %s266, 1
    %268 = vsyncpa [#allocation4], 1
    %s269 = scalar_lea.sflag [#allocation4], 1
    %270 = vsyncpa %s269, 1
    %271 = vsyncpa [#allocation5], 1
    %s272 = scalar_lea.sflag [#allocation5], 1
    %273 = vsyncpa %s272, 1

</llo_original>
